<compile_context>
chip_gen: v5e
topology: v5e:2x2
jax: 0.10.0
libtpu: 0.0.40
codegen_flags: <defaults>
</compile_context>

<pallas_src>
import jax
import jax.numpy as jnp
from jax.experimental import pallas as pl
from jax.experimental.pallas import tpu as pltpu


def _class_token_seg3_kernel(a_ref, kb_ref, x_ref, out_ref):
    # a_ref:   (NC, C)      folded weight A = ((cls @ Wk^T + bk) * scale) @ Wq
    # kb_ref:  (NC, 1)      folded bias kb = k_scaled @ bq   (f32)
    # x_ref:   (1, C, TN0)  spatial tokens, native NCHW-flattened layout
    # out_ref: (1, NC, TN0)
    scores = jnp.dot(a_ref[...], x_ref[0],
                     preferred_element_type=jnp.float32)          # (NC, TN0)
    out_ref[0] = (scores + kb_ref[...]).astype(out_ref.dtype)


def _pick_tile_n0(n0, c, itemsize, target_bytes=8 << 20, max_tile=4096):
    """Largest multiple-of-128 divisor of n0 keeping one x block <= target."""
    if n0 % 128 != 0:
        return n0  # full-extent block still satisfies the (8,128) layout rule
    cap = max(128, min(max_tile, target_bytes // max(1, c * itemsize)))
    cap = min(n0, (cap // 128) * 128)
    tile = 128
    for cand in range(128, cap + 1, 128):
        if n0 % cand == 0:
            tile = cand
    return tile


def class_token_seg3(x_nchw, params, *, num_classes, num_heads=1,
                     compute_dtype=jnp.bfloat16):
    """Pallas implementation of Class_Token_Seg3.forward (num_heads == 1).

    x_nchw : (b, c, h, w) float32
    returns: (x_cls (b, num_classes, h, w) f32, prop_tokens (b, num_classes, c))
    """
    b, c, h, w = x_nchw.shape
    dim = c
    head_dim = dim // num_heads
    scale = head_dim ** (-0.5)
    n0 = h * w
    nc = num_classes

    # ---- batch-independent precompute (tiny, NC x C) in plain JAX ----------
    cls_tok = params["cls_token"].reshape(nc, dim).astype(jnp.float32)
    k_scaled = (cls_tok @ params["wk"].T + params["bk"]) * scale        # (NC, C)
    a_mat = (k_scaled @ params["wq"]).astype(compute_dtype)             # (NC, C)
    kb = (k_scaled @ params["bq"]).reshape(nc, 1).astype(jnp.float32)   # (NC, 1)

    # x in native NCHW-flattened layout: (B, C, N0) — free reshape, no transpose.
    x_tok = x_nchw.reshape(b, c, n0).astype(compute_dtype)

    comp_bytes = jnp.dtype(compute_dtype).itemsize
    tn0 = _pick_tile_n0(n0, c, comp_bytes)
    n_tiles = pl.cdiv(n0, tn0)

    # Explicit VMEM budget: double-buffered x/out tiles + constant A/kb + margin.
    vmem_bytes = (2 * c * tn0 * comp_bytes          # x tiles
                  + 2 * nc * tn0 * 4                # out tiles (f32)
                  + 2 * nc * c * comp_bytes         # A buffers
                  + 2 * nc * 4                      # kb buffers
                  + (4 << 20))
    vmem_bytes = int(min(vmem_bytes, 128 << 20))

    grid_spec = pltpu.PrefetchScalarGridSpec(
        num_scalar_prefetch=0,
        grid=(b, n_tiles),
        in_specs=[
            pl.BlockSpec((nc, dim), lambda i, j: (0, 0)),          # A (constant)
            pl.BlockSpec((nc, 1), lambda i, j: (0, 0)),            # kb (constant)
            pl.BlockSpec((1, dim, tn0), lambda i, j: (i, 0, j)),   # x tile
        ],
        out_specs=pl.BlockSpec((1, nc, tn0), lambda i, j: (i, 0, j)),
    )

    scores = pl.pallas_call(
        _class_token_seg3_kernel,
        grid_spec=grid_spec,
        out_shape=jax.ShapeDtypeStruct((b, nc, n0), jnp.float32),
        compiler_params=pltpu.CompilerParams(
            dimension_semantics=("parallel", "parallel"),
            vmem_limit_bytes=vmem_bytes),
    )(a_mat, kb, x_tok)

    x_cls = scores.reshape(b, nc, h, w)
    prop_tokens = jnp.broadcast_to(
        params["prop_token"].reshape(1, nc, dim), (b, nc, dim))
    return x_cls, prop_tokens


def _reference(x_nchw, params, *, num_classes, num_heads=1):
    """Pure-JAX f32 reference mirroring the PyTorch forward (num_heads == 1)."""
    b, c, h, w = x_nchw.shape
    dim = c
    scale = (dim // num_heads) ** (-0.5)
    x = jnp.transpose(x_nchw.reshape(b, c, h * w), (0, 2, 1))          # (B, N0, C)
    cls = jnp.broadcast_to(params["cls_token"], (b, num_classes, dim))
    xcat = jnp.concatenate([cls, x], axis=1)                           # (B, N, C)
    q = xcat @ params["wq"].T + params["bq"]                           # (B, N, C)
    k = (xcat[:, :num_classes] @ params["wk"].T + params["bk"]) * scale
    attn = jnp.einsum("bkc,bnc->bkn", k, q,
                      preferred_element_type=jnp.float32)              # (B, NC, N)
    attn = jnp.transpose(attn, (0, 2, 1))[:, num_classes:]             # (B, N0, NC)
    x_cls = jnp.transpose(attn, (0, 2, 1)).reshape(b, num_classes, h, w)
    prop = jnp.broadcast_to(params["prop_token"], (b, num_classes, dim))
    return x_cls, prop


if __name__ == "__main__":
    # Small but representative shapes: N0 = 16*16 = 256 is a multiple of 128
    # so output stores are lane-dense.
    B, DIM, H, W = 2, 32, 16, 16
    NUM_CLASSES = 16
    NUM_HEADS = 1  # required for the PyTorch forward to be well-formed

    key = jax.random.PRNGKey(0)
    k_x, k_wq, k_bq, k_wk, k_bk, k_cls, k_prop = jax.random.split(key, 7)

    x = jax.random.normal(k_x, (B, DIM, H, W), dtype=jnp.float32)

    params = {
        # nn.Linear weights are (out_features, in_features); deterministic init.
        "wq": jax.random.normal(k_wq, (DIM, DIM), dtype=jnp.float32) * (DIM ** -0.5),
        "bq": jax.random.normal(k_bq, (DIM,), dtype=jnp.float32) * 0.01,
        "wk": jax.random.normal(k_wk, (DIM, DIM), dtype=jnp.float32) * (DIM ** -0.5),
        "bk": jax.random.normal(k_bk, (DIM,), dtype=jnp.float32) * 0.01,
        # trunc_normal_(std=0.02) approximated by normal * 0.02 (deterministic).
        "cls_token": jax.random.normal(k_cls, (1, NUM_CLASSES, DIM), dtype=jnp.float32) * 0.02,
        "prop_token": jax.random.normal(k_prop, (1, NUM_CLASSES, DIM), dtype=jnp.float32) * 0.02,
    }

    x_cls_ref, prop_ref = _reference(
        x, params, num_classes=NUM_CLASSES, num_heads=NUM_HEADS)

    # ---- f32 compute path: tight correctness check --------------------------
    x_cls32, prop32 = class_token_seg3(
        x, params, num_classes=NUM_CLASSES, num_heads=NUM_HEADS,
        compute_dtype=jnp.float32)
    jax.block_until_ready((x_cls32, prop32))
    assert x_cls32.shape == (B, NUM_CLASSES, H, W)
    assert prop32.shape == (B, NUM_CLASSES, DIM)
    assert jnp.allclose(x_cls32, x_cls_ref, atol=1e-4, rtol=1e-4)
    assert jnp.allclose(prop32, prop_ref)

    # ---- bf16 compute path (v6e/v7x fast path): loose correctness check -----
    x_cls_bf, prop_bf = class_token_seg3(
        x, params, num_classes=NUM_CLASSES, num_heads=NUM_HEADS,
        compute_dtype=jnp.bfloat16)
    jax.block_until_ready((x_cls_bf, prop_bf))
    assert jnp.allclose(x_cls_bf, x_cls_ref, atol=2e-3, rtol=2e-2)
    assert jnp.allclose(prop_bf, prop_ref)

    print("KERNEL_OK")
</pallas_src>

<mosaic_0001>
module attributes {stable_mosaic.version = 11 : i64} {
  func.func @_class_token_seg3_kernel(%arg0: i32, %arg1: i32, %arg2: memref<16x32xf32, #tpu.memory_space<vmem>>, %arg3: memref<16x1xf32, #tpu.memory_space<vmem>>, %arg4: memref<1x32x256xf32, #tpu.memory_space<vmem>>, %arg5: memref<1x16x256xf32, #tpu.memory_space<vmem>>) attributes {dimension_semantics = [#tpu.dimension_semantics<parallel>, #tpu.dimension_semantics<parallel>], iteration_bounds = array<i64: 2, 1>, scalar_prefetch = 0 : i64, scratch_operands = 0 : i64, tpu.core_type = #tpu.core_type<tc>, window_params = [{pipeline_mode = #tpu.pipeline_mode<synchronous>, transform_indices = @transform_0, window_bounds = array<i64: 16, 32>}, {pipeline_mode = #tpu.pipeline_mode<synchronous>, transform_indices = @transform_1, window_bounds = array<i64: 16, 1>}, {transform_indices = @transform_2, window_bounds = array<i64: 1, 32, 256>}, {transform_indices = @transform_3, window_bounds = array<i64: 1, 16, 256>}]} {
    %c0 = arith.constant 0 : index
    %c0_0 = arith.constant 0 : index
    %0 = vector.load %arg2[%c0, %c0_0] : memref<16x32xf32, #tpu.memory_space<vmem>>, vector<16x32xf32>
    %c0_1 = arith.constant 0 : index
    %c0_2 = arith.constant 0 : index
    %c0_3 = arith.constant 0 : index
    %1 = vector.load %arg4[%c0_1, %c0_2, %c0_3] : memref<1x32x256xf32, #tpu.memory_space<vmem>>, vector<1x32x256xf32>
    %2 = vector.shape_cast %1 : vector<1x32x256xf32> to vector<32x256xf32>
    %cst = arith.constant dense<0.000000e+00> : vector<16x256xf32>
    %3 = tpu.matmul %0, %2, %cst {dimension_numbers = #tpu.dot_dimension_numbers<[1], [0], [0], [1], [0, 0, 1, 1], [], []>} : vector<16x32xf32>, vector<32x256xf32>, vector<16x256xf32> -> vector<16x256xf32>
    %c0_4 = arith.constant 0 : index
    %c0_5 = arith.constant 0 : index
    %4 = vector.load %arg3[%c0_4, %c0_5] : memref<16x1xf32, #tpu.memory_space<vmem>>, vector<16x1xf32>
    %5 = vector.broadcast %4 : vector<16x1xf32> to vector<16x256xf32>
    %6 = arith.addf %3, %5 : vector<16x256xf32>
    %c0_6 = arith.constant 0 : index
    %c0_7 = arith.constant 0 : index
    %c0_8 = arith.constant 0 : index
    %7 = vector.load %arg5[%c0_6, %c0_7, %c0_8] : memref<1x16x256xf32, #tpu.memory_space<vmem>>, vector<1x16x256xf32>
    %8 = vector.shape_cast %7 : vector<1x16x256xf32> to vector<16x256xf32>
    %9 = vector.shape_cast %6 : vector<16x256xf32> to vector<1x16x256xf32>
    tpu.vector_store %arg5[%c0_6, %c0_7, %c0_8], %9 {strides = array<i32>} : memref<1x16x256xf32, #tpu.memory_space<vmem>>, vector<1x16x256xf32>,
    return
  }
  func.func @transform_0(%arg0: i32, %arg1: i32) -> (i32, i32) {
    %c0_i32 = arith.constant 0 : i32
    %c0_i32_0 = arith.constant 0 : i32
    %c0_i32_1 = arith.constant 0 : i32
    return %c0_i32, %c0_i32_0 : i32, i32
  }
  func.func @transform_1(%arg0: i32, %arg1: i32) -> (i32, i32) {
    %c0_i32 = arith.constant 0 : i32
    %c0_i32_0 = arith.constant 0 : i32
    %c0_i32_1 = arith.constant 0 : i32
    return %c0_i32, %c0_i32_0 : i32, i32
  }
  func.func @transform_2(%arg0: i32, %arg1: i32) -> (i32, i32, i32) {
    %c0_i32 = arith.constant 0 : i32
    %c0_i32_0 = arith.constant 0 : i32
    return %arg0, %c0_i32, %arg1 : i32, i32, i32
  }
  func.func @transform_3(%arg0: i32, %arg1: i32) -> (i32, i32, i32) {
    %c0_i32 = arith.constant 0 : i32
    %c0_i32_0 = arith.constant 0 : i32
    return %arg0, %c0_i32, %arg1 : i32, i32, i32
  }
}

</mosaic_0001>

<llo_original>
// kernel: tpu_custom_call.1
$region0: #{tpu_custom_call.1}
  #allocation0 [shape = 'u32[]', space=smem, size = 0x4, offset = 0x4, fixed_abs, tag = 'smem constant byte address 0x4 - core index']
  #allocation1 [shape = 'u32[72,128]{1,0:T(1,128)}', space=vmem, size = 0x9000, scoped, tag = 'internal scratch']
  %s0 = inlined_call_operand.vmem [shape: f32[16,32], index: 0, kind: input, shape index: {}]
  %s1 = inlined_call_operand.vmem [shape: f32[16,1], index: 1, kind: input, shape index: {}]
  %s2 = inlined_call_operand.hbm [shape: f32[2,32,256], index: 2, kind: input, shape index: {}]
  %s3 = inlined_call_operand.hbm [shape: f32[2,16,256], index: 3, kind: output, shape index: {}]
  %s4 = sld [smem:[#allocation0]]
  $region49: #{tpu_custom_call.1} parent=0
    _
  %s6 = ssub.s32 1, %s4
  %s7 = scalar_select 0, %s6, %s4
  $region1: #{tpu_custom_call.1} parent=0
    #allocation2 [shape = 'u8[65536]{0}', space=vmem, size = 0x10000, scoped, tag = 'input window, operand 2']
    #allocation3 [shape = 's32[2]{0}', space=sflag, size = 0x8, scoped, tag = 'scoped memory for tpu_custom_call.1']
    #allocation4 [shape = 's32[2]{0}', space=sflag, size = 0x8, scoped, tag = 'scoped memory for tpu_custom_call.1']
    #allocation5 [shape = 'u8[32768]{0}', space=vmem, size = 0x8000, scoped, tag = 'output window, operand 0']
    %8 = vsyncpa [#allocation3], 0
    %s9 = scalar_lea.sflag [#allocation3], 1
    %10 = vsyncpa %s9, 0
    %11 = vsyncpa [#allocation4], 0
    %s12 = scalar_lea.sflag [#allocation4], 1
    %13 = vsyncpa %s12, 0
    loop: start=0, step=1, limit=4
    $region2: #{tpu_custom_call.1} parent=1 // loop_pre_header
      _
    $region3: #{tpu_custom_call.1} parent=1 // loop_header
      %s15 = sphi 0, %s19
      %p16 = scmp.ge.s32.totalorder %s15, 4
      %s22 = sphi 0, %s34
      %s23 = sphi 0, %s30
      %s24 = sphi 0, %s22
      %s25 = sphi 0, %s23
      %s26 = sphi 0, %s24
      %s27 = sphi 0, %s25
      %s35 = sphi 0, %s35
      %s37 = sphi 0, %s35
      %s38 = sphi 0, %s37
      %s52 = sphi 0, %s38
      %s56 = sphi 0, %s56
      %s58 = sphi 0, %s56
      %s59 = sphi 0, %s58
      %s73 = sphi 0, %s59
      %s81 = sphi 0, %s83
      %s84 = sphi 0, %s81
      %s85 = sphi 0, %s84
      %s101 = sphi 0, %s85
      %s109 = sphi 0, %s111
      %s112 = sphi 0, %s109
      %s113 = sphi 0, %s112
      %s129 = sphi 0, %s113
    $region4: #{tpu_custom_call.1} parent=1 // loop_header_branch
      %18 = sbr.rel (%p16) target = $region8
    $region5: #{tpu_custom_call.1} parent=1 // loop_body
      %s20 = ssub.s32 %s15, 1
      %s21 = ssub.s32 %s15, 2
      %s28 = sadd.s32 1, %s23
      %p29 = scmp.ge.s32.totalorder %s28, 1
      %s30 = scalar_select %p29, 0, %s28
      %s31 = sadd.s32 1, %s22
      %s32 = scalar_select %p29, %s31, %s22
      %p33 = scmp.ge.s32.totalorder %s32, 2
      %s34 = scalar_select %p33, 0, %s32
      %s36 = sadd.s32 %s35, 1
      %p39 = scmp.eq.s32.totalorder %s15, 1
      %p40 = scmp.ne.s32.totalorder %s35, %s37
      %p41 = scmp.eq.s32.totalorder %s15, 0
      %p42 = por %p40, %p41
      %p43 = scmp.ne.s32.totalorder %s35, %s37
      %p44 = scmp.eq.s32.totalorder %s20, 1
      %p45 = por %p43, %p44
      %p46 = scmp.ne.s32.totalorder %s37, %s38
      %p47 = scmp.eq.s32.totalorder %s20, 0
      %p48 = por %p46, %p47
      %p49 = scmp.ne.s32.totalorder %s37, %s38
      %p50 = scmp.eq.s32.totalorder %s21, 1
      %p51 = por %p49, %p50
      %p53 = scmp.ne.s32.totalorder %s38, %s52
      %p54 = scmp.eq.s32.totalorder %s21, 0
      %p55 = por %p53, %p54
      %s57 = sadd.s32 %s56, 1
      %p60 = scmp.eq.s32.totalorder %s15, 1
      %p61 = scmp.ne.s32.totalorder %s56, %s58
      %p62 = scmp.eq.s32.totalorder %s15, 0
      %p63 = por %p61, %p62
      %p64 = scmp.ne.s32.totalorder %s56, %s58
      %p65 = scmp.eq.s32.totalorder %s20, 1
      %p66 = por %p64, %p65
      %p67 = scmp.ne.s32.totalorder %s58, %s59
      %p68 = scmp.eq.s32.totalorder %s20, 0
      %p69 = por %p67, %p68
      %p70 = scmp.ne.s32.totalorder %s58, %s59
      %p71 = scmp.eq.s32.totalorder %s21, 1
      %p72 = por %p70, %p71
      %p74 = scmp.ne.s32.totalorder %s59, %s73
      %p75 = scmp.eq.s32.totalorder %s21, 0
      %p76 = por %p74, %p75
      %s77 = ssub.s32 %s22, %s34
      %s78 = ssub.s32 %s23, %s30
      %s79 = sor.u32 %s77, %s78
      %p80 = scmp.eq.s32.totalorder %s79, 0
      %s82 = sadd.s32 %s81, 1
      %s83 = scalar_select %p80, %s81, %s82
      %p86 = pneg %p80
      %p87 = scmp.eq.s32.totalorder %s15, 1
      %p88 = por %p86, %p87
      %p89 = scmp.ne.s32.totalorder %s81, %s84
      %p90 = scmp.eq.s32.totalorder %s15, 0
      %p91 = por %p89, %p90
      %p92 = scmp.ne.s32.totalorder %s81, %s84
      %p93 = scmp.eq.s32.totalorder %s20, 1
      %p94 = por %p92, %p93
      %p95 = scmp.ne.s32.totalorder %s84, %s85
      %p96 = scmp.eq.s32.totalorder %s20, 0
      %p97 = por %p95, %p96
      %p98 = scmp.ne.s32.totalorder %s84, %s85
      %p99 = scmp.eq.s32.totalorder %s21, 1
      %p100 = por %p98, %p99
      %p102 = scmp.ne.s32.totalorder %s85, %s101
      %p103 = scmp.eq.s32.totalorder %s21, 0
      %p104 = por %p102, %p103
      %s105 = ssub.s32 %s22, %s34
      %s106 = ssub.s32 %s23, %s30
      %s107 = sor.u32 %s105, %s106
      %p108 = scmp.eq.s32.totalorder %s107, 0
      %s110 = sadd.s32 %s109, 1
      %s111 = scalar_select %p108, %s109, %s110
      %p114 = pneg %p108
      %p115 = scmp.eq.s32.totalorder %s15, 1
      %p116 = por %p114, %p115
      %p117 = scmp.ne.s32.totalorder %s109, %s112
      %p118 = scmp.eq.s32.totalorder %s15, 0
      %p119 = por %p117, %p118
      %p120 = scmp.ne.s32.totalorder %s109, %s112
      %p121 = scmp.eq.s32.totalorder %s20, 1
      %p122 = por %p120, %p121
      %p123 = scmp.ne.s32.totalorder %s112, %s113
      %p124 = scmp.eq.s32.totalorder %s20, 0
      %p125 = por %p123, %p124
      %p126 = scmp.ne.s32.totalorder %s112, %s113
      %p127 = scmp.eq.s32.totalorder %s21, 1
      %p128 = por %p126, %p127
      %p130 = scmp.ne.s32.totalorder %s113, %s129
      %p131 = scmp.eq.s32.totalorder %s21, 0
      %p132 = por %p130, %p131
      %p133 = scmp.le.s32.totalorder 1, %s15
      %p134 = scmp.lt.s32.totalorder %s15, 3
      %p135 = pnand %p133, %p134
      %p136 = pneg %p135
      // Predicated region
      $region9: #{tpu_custom_call.1} parent=5 // pred_check
        _
      $region10: #{tpu_custom_call.1} parent=5 // pred_check_branch
        %138 = sbr.rel (%p135) target = $region12
      $region11: #{tpu_custom_call.1} parent=5 // pred_region
        %s139 = ssub.s32 %s15, 1
        // Predicated region
        $region13: #{tpu_custom_call.1} parent=11 // pred_check
          %p140 = pneg %p48
        $region14: #{tpu_custom_call.1} parent=11 // pred_check_branch
          %142 = sbr.rel (%p140) target = $region16
        $region15: #{tpu_custom_call.1} parent=11 // pred_region
          _
        $region16: #{tpu_custom_call.1} parent=11 // pred_fallthru
          _
        // Predicated region
        $region17: #{tpu_custom_call.1} parent=11 // pred_check
          %p143 = pneg %p69
        $region18: #{tpu_custom_call.1} parent=11 // pred_check_branch
          %145 = sbr.rel (%p143) target = $region20
        $region19: #{tpu_custom_call.1} parent=11 // pred_region
          _
        $region20: #{tpu_custom_call.1} parent=11 // pred_fallthru
          _
      $region12: #{tpu_custom_call.1} parent=5 // pred_fallthru
        _
      %p146 = scmp.lt.s32.totalorder %s15, 2
      // Predicated region
      $region21: #{tpu_custom_call.1} parent=5 // pred_check
        %p147 = pneg %p146
      $region22: #{tpu_custom_call.1} parent=5 // pred_check_branch
        %149 = sbr.rel (%p147) target = $region24
      $region23: #{tpu_custom_call.1} parent=5 // pred_region
        // Predicated region
        $region25: #{tpu_custom_call.1} parent=23 // pred_check
          %p150 = pneg %p91
        $region26: #{tpu_custom_call.1} parent=23 // pred_check_branch
          %152 = sbr.rel (%p150) target = $region28
        $region27: #{tpu_custom_call.1} parent=23 // pred_region
          %s153 = sand.u32 %s81, 1
          %s154 = scalar_lea.sflag [#allocation3], %s153
          %s155 = sand.u32 %s81, 1
          %s156 = smul.addr %s155, 64
          %s157 = scalar_lea.vmem [#allocation2], %s156
          %s158 = smul.u32 2, %s23
          %160 = vsyncadd %s154, 0
          %s161 = smul.addr %s22, 8
          %s162 = sadd.s32 %s158, %s161
          %s163 = smul.addr %s162, 8
          %s164 = scalar_lea.hbm %s2, %s163
          %s165 = sshll.u32 %s164, 4
          %s166 = int_to_ptr.hbm [resolvable:$true] %s165
          %s167 = sshll.u32 %s157, 4
          %s168 = int_to_ptr.vmem [resolvable:$true] %s167
          %173 = dma.hbm_to_vmem [thread:$0]  %s166, 1024, %s168, %s154, 256, 256, 16
        $region28: #{tpu_custom_call.1} parent=23 // pred_fallthru
          _
      $region24: #{tpu_custom_call.1} parent=5 // pred_fallthru
        _
      %p174 = scmp.le.s32.totalorder 1, %s15
      %p175 = scmp.lt.s32.totalorder %s15, 3
      %p176 = pnand %p174, %p175
      %p177 = pneg %p176
      // Predicated region
      $region29: #{tpu_custom_call.1} parent=5 // pred_check
        _
      $region30: #{tpu_custom_call.1} parent=5 // pred_check_branch
        %179 = sbr.rel (%p176) target = $region32
      $region31: #{tpu_custom_call.1} parent=5 // pred_region
        %s180 = ssub.s32 %s15, 1
        %s181 = sand.u32 %s84, 1
        %s182 = scalar_lea.sflag [#allocation3], %s181
        %s183 = sand.u32 %s84, 1
        %s184 = smul.addr %s183, 64
        %s185 = scalar_lea.vmem [#allocation2], %s184
        // Predicated region
        $region33: #{tpu_custom_call.1} parent=31 // pred_check
          %p186 = pneg %p97
        $region34: #{tpu_custom_call.1} parent=31 // pred_check_branch
          %188 = sbr.rel (%p186) target = $region36
        $region35: #{tpu_custom_call.1} parent=31 // pred_region
          %190 = dma.done %s182, 1024
        $region36: #{tpu_custom_call.1} parent=31 // pred_fallthru
          _
        %p191 = pneg %p48
        %p192 = pneg %p45
        %p193 = pneg %p69
        %p194 = pneg %p66
        %s195 = sand.u32 %s84, 1
        %s196 = scalar_lea.sflag [#allocation3], %s195
        %s197 = sand.u32 %s84, 1
        %s198 = smul.addr %s197, 64
        %s199 = scalar_lea.vmem [#allocation2], %s198
        %p200 = pneg %p97
        %p201 = pneg %p94
        %p202 = pneg %p125
        %p203 = pneg %p122
        %s204 = sand.u32 %s112, 1
        %s205 = scalar_lea.sflag [#allocation4], %s204
        %s206 = sand.u32 %s112, 1
        %s207 = smul.addr %s206, 32
        %s208 = scalar_lea.vmem [#allocation5], %s207
        %s209 = smul.u32 2, %s25
        %s210 = smul.u32 2, %s25
        %v211 = vld [vmem:[%s0] sm:$0xff]
        %v212 = vld [vmem:[%s0 + $0x8] sm:$0xff]
        %v213 = vld [vmem:[%s185] sm:$0xff]
        %v214 = vld [vmem:[%s185 + $0x8] sm:$0xff]
        %v215 = vld [vmem:[%s185 + $0x10] sm:$0xff]
        %v216 = vld [vmem:[%s185 + $0x18] sm:$0xff]
        %v217 = vld [vmem:[%s185 + $0x20] sm:$0xff]
        %v218 = vld [vmem:[%s185 + $0x28] sm:$0xff]
        %v219 = vld [vmem:[%s185 + $0x30] sm:$0xff]
        %v220 = vld [vmem:[%s185 + $0x38] sm:$0xff]
        %v221 = vld [vmem:[%s1] sm:$0xff]
        %v222 = vld [vmem:[%s1 + $0x8] sm:$0xff]
        %224 = vset.pattern.permute.xlu0 0
        %225 = vperm.xlu0 %224, %v221
        %v226 = vpop.permute.xlu0 %225
        %229 = vset.pattern.permute.xlu0 0
        %230 = vperm.xlu0 %229, %v222
        %v231 = vpop.permute.xlu0 %230
        %vm233 = vcmask 261120
        %v235 = vsel %vm233, %v211, 0
        %v238 = vsel %vm233, %v212, 0
        %240 = vmatpush.msra.mxu0 0.0
        %241 = vmatpush.msra.mxu0 0.0
        %242 = vmatpush.msra.mxu0 0.0
        %243 = vmatpush.msra.mxu0 0.0
        %244 = vmatpush.msra.mxu0 0.0
        %245 = vmatpush.msra.mxu0 0.0
        %246 = vmatpush.msra.mxu0 0.0
        %247 = vmatpush.msra.mxu0 0.0
        %248 = vmatpush.msra.mxu0 0.0
        %249 = vmatpush.msra.mxu0 0.0
        %250 = vmatpush.msra.mxu0 0.0
        %251 = vmatpush.msra.mxu0 0.0
        %252 = vmatpush.msra.mxu0 %v219
        %253 = vmatpush.msra.mxu0 %v217
        %254 = vmatpush.msra.mxu0 %v215
        %255 = vmatpush.msra.mxu0 %v213
        %256 = vmatmul.f32.gmra.mxu0 %v235
        %v257 = vpop.f32.mrf.mxu0
        %v258 = vadd.f32 %v226, %v257
        %259 = vmatmul.f32.gmra.mxu0 %v238
        %v260 = vpop.f32.mrf.mxu0
        %v261 = vadd.f32 %v231, %v260
        %262 = vdwg.mxu0
        %263 = vmatpush.msra.mxu0 0.0
        %264 = vmatpush.msra.mxu0 0.0
        %265 = vmatpush.msra.mxu0 0.0
        %266 = vmatpush.msra.mxu0 0.0
        %267 = vmatpush.msra.mxu0 0.0
        %268 = vmatpush.msra.mxu0 0.0
        %269 = vmatpush.msra.mxu0 0.0
        %270 = vmatpush.msra.mxu0 0.0
        %271 = vmatpush.msra.mxu0 0.0
        %272 = vmatpush.msra.mxu0 0.0
        %273 = vmatpush.msra.mxu0 0.0
        %274 = vmatpush.msra.mxu0 0.0
        %275 = vmatpush.msra.mxu0 %v220
        %276 = vmatpush.msra.mxu0 %v218
        %277 = vmatpush.msra.mxu0 %v216
        %278 = vmatpush.msra.mxu0 %v214
        %279 = vmatmul.f32.gmra.mxu0 %v235
        %v280 = vpop.f32.mrf.mxu0
        %v281 = vadd.f32 %v226, %v280
        %282 = vmatmul.f32.gmra.mxu0 %v238
        %v283 = vpop.f32.mrf.mxu0
        %v284 = vadd.f32 %v231, %v283
        %285 = vdwg.mxu0
        %286 = vst [vmem:[%s208] sm:$0xff] %v258
        %287 = vst [vmem:[%s208 + $0x8] sm:$0xff] %v281
        %288 = vst [vmem:[%s208 + $0x10] sm:$0xff] %v261
        %289 = vst [vmem:[%s208 + $0x18] sm:$0xff] %v284
        %s290 = sand.u32 %s112, 1
        %s291 = scalar_lea.sflag [#allocation4], %s290
        %s292 = sand.u32 %s112, 1
        %s293 = smul.addr %s292, 32
        %s294 = scalar_lea.vmem [#allocation5], %s293
        // Predicated region
        $region37: #{tpu_custom_call.1} parent=31 // pred_check
          %p295 = pneg %p122
        $region38: #{tpu_custom_call.1} parent=31 // pred_check_branch
          %297 = sbr.rel (%p295) target = $region40
        $region39: #{tpu_custom_call.1} parent=31 // pred_region
          %s298 = smul.u32 2, %s25
          %300 = vsyncadd %s291, 0
          %s301 = smul.addr %s24, 4
          %s302 = sadd.s32 %s298, %s301
          %s303 = smul.addr %s302, 8
          %s304 = scalar_lea.hbm %s3, %s303
          %s305 = sshll.u32 %s294, 4
          %s306 = int_to_ptr.vmem [resolvable:$true] %s305
          %s307 = sshll.u32 %s304, 4
          %s308 = int_to_ptr.hbm [resolvable:$true] %s307
          %313 = dma.vmem_to_hbm [thread:$0]  %s306, 512, %s308, %s291, 256, 256, 16
        $region40: #{tpu_custom_call.1} parent=31 // pred_fallthru
          _
      $region32: #{tpu_custom_call.1} parent=5 // pred_fallthru
        _
      %p314 = scmp.le.s32.totalorder 2, %s15
      // Predicated region
      $region41: #{tpu_custom_call.1} parent=5 // pred_check
        %p315 = pneg %p314
      $region42: #{tpu_custom_call.1} parent=5 // pred_check_branch
        %317 = sbr.rel (%p315) target = $region44
      $region43: #{tpu_custom_call.1} parent=5 // pred_region
        %s318 = ssub.s32 %s15, 2
        // Predicated region
        $region45: #{tpu_custom_call.1} parent=43 // pred_check
          %p319 = pneg %p128
        $region46: #{tpu_custom_call.1} parent=43 // pred_check_branch
          %321 = sbr.rel (%p319) target = $region48
        $region47: #{tpu_custom_call.1} parent=43 // pred_region
          %s322 = sand.u32 %s113, 1
          %s323 = scalar_lea.sflag [#allocation4], %s322
          %s324 = sand.u32 %s113, 1
          %s325 = smul.addr %s324, 32
          %s326 = scalar_lea.vmem [#allocation5], %s325
          %328 = dma.done %s323, 512
        $region48: #{tpu_custom_call.1} parent=43 // pred_fallthru
          _
      $region44: #{tpu_custom_call.1} parent=5 // pred_fallthru
        _
    $region6: #{tpu_custom_call.1} parent=1 // loop_footer
      %s19 = sadd.s32 1, %s15
    $region7: #{tpu_custom_call.1} parent=1 // loop_footer_branch
      %14 = sbr.rel target = $region3
    $region8: #{tpu_custom_call.1} parent=1 // loop_exit
      _
    %329 = vsyncpa [#allocation3], 1
    %s330 = scalar_lea.sflag [#allocation3], 1
    %331 = vsyncpa %s330, 1
    %332 = vsyncpa [#allocation4], 1
    %s333 = scalar_lea.sflag [#allocation4], 1
    %334 = vsyncpa %s333, 1

</llo_original>
